<compile_context>
chip_gen: v5e
topology: v5e:2x2
jax: 0.10.0
libtpu: 0.0.40
codegen_flags: <defaults>
</compile_context>

<pallas_src>
import math

import jax
import jax.numpy as jnp
from jax.experimental import pallas as pl
from jax.experimental.pallas import tpu as pltpu

_LANE = 128


def _round_up(n, m):
    return ((n + m - 1) // m) * m


def _dqn_mlp_kernel(x_ref, w1_ref, b1_ref, w2_ref, b2_ref, w3_ref, b3_ref, q_ref):
    # Layer 1: Linear(input_dim, 12 (padded to 128)) + ReLU
    h1 = jnp.dot(x_ref[...], w1_ref[...], preferred_element_type=jnp.float32) + b1_ref[...]
    h1 = jnp.maximum(h1, 0.0)
    # Layer 2: Linear(12, 8) (both padded to 128) + ReLU
    h2 = jnp.dot(h1, w2_ref[...], preferred_element_type=jnp.float32) + b2_ref[...]
    h2 = jnp.maximum(h2, 0.0)
    # Layer 3: Linear(8, num_actions) (padded to 128), no activation -> Q-values
    q = jnp.dot(h2, w3_ref[...], preferred_element_type=jnp.float32) + b3_ref[...]
    q_ref[...] = q.astype(q_ref.dtype)


def dqn_forward(x, params, *, block_batch=512, compute_dtype=jnp.float32):
    """Run the 3-layer MLP forward pass inside one batch-tiled Pallas kernel.

    x:      (batch, input_dim) float32
    params: dict from init_dqn_params (lane-padded weights/biases)
    compute_dtype: set to jnp.bfloat16 on v6e/v7x for large batches to halve
                   HBM traffic on x/weights (accumulation stays f32).
    returns Q: (batch, num_actions) float32
    """
    batch, input_dim = x.shape
    num_actions = params["num_actions"]

    w1, b1 = params["w1"], params["b1"]
    w2, b2 = params["w2"], params["b2"]
    w3, b3 = params["w3"], params["b3"]
    assert w1.shape[0] == input_dim, "input_dim mismatch with params"
    h1p, h2p, ap = w1.shape[1], w2.shape[1], w3.shape[1]

    # Batch tile: at least 8 (sublane), at most block_batch; pad batch to a
    # multiple of the tile so the grid has no ragged tail.
    tb = max(8, min(block_batch, _round_up(batch, 8)))
    batch_pad = _round_up(batch, tb)
    if batch_pad != batch:
        x = jnp.pad(x, ((0, batch_pad - batch), (0, 0)))

    if compute_dtype != jnp.float32:
        x = x.astype(compute_dtype)
        w1 = w1.astype(compute_dtype)
        w2 = w2.astype(compute_dtype)
        w3 = w3.astype(compute_dtype)

    grid = (batch_pad // tb,)
    itemsize = jnp.dtype(x.dtype).itemsize
    flops = 2 * batch_pad * (input_dim * h1p + h1p * h2p + h2p * ap)
    bytes_accessed = (
        batch_pad * input_dim * itemsize                       # x
        + (w1.size + w2.size + w3.size) * itemsize             # weights (fetched once)
        + (b1.size + b2.size + b3.size) * 4                    # biases
        + batch_pad * ap * 4                                   # Q output
    )

    q_pad = pl.pallas_call(
        _dqn_mlp_kernel,
        out_shape=jax.ShapeDtypeStruct((batch_pad, ap), jnp.float32),
        grid_spec=pltpu.PrefetchScalarGridSpec(
            num_scalar_prefetch=0,
            grid=grid,
            in_specs=[
                pl.BlockSpec((tb, input_dim), lambda i: (i, 0)),   # x: tiled over batch
                pl.BlockSpec((input_dim, h1p), lambda i: (0, 0)),  # w1: resident
                pl.BlockSpec((1, h1p), lambda i: (0, 0)),          # b1: resident
                pl.BlockSpec((h1p, h2p), lambda i: (0, 0)),        # w2: resident
                pl.BlockSpec((1, h2p), lambda i: (0, 0)),          # b2: resident
                pl.BlockSpec((h2p, ap), lambda i: (0, 0)),         # w3: resident
                pl.BlockSpec((1, ap), lambda i: (0, 0)),           # b3: resident
            ],
            out_specs=pl.BlockSpec((tb, ap), lambda i: (i, 0)),    # lane-dense (128-wide) Q
        ),
        compiler_params=pltpu.CompilerParams(
            dimension_semantics=("parallel",),  # v7x: shard batch axis across both TCs
        ),
        cost_estimate=pl.CostEstimate(
            flops=flops, transcendentals=0, bytes_accessed=bytes_accessed
        ),
    )(x, w1, b1, w2, b2, w3, b3)

    # Strip batch padding and the zero-padded action columns.
    return q_pad[:batch, :num_actions]


# ----------------------------- initialization ------------------------------

def _kaiming_uniform_relu(key, out_features, in_features):
    # Matches torch.nn.init.kaiming_uniform_(w, nonlinearity='relu') on (out, in):
    # gain = sqrt(2), bound = gain * sqrt(3 / fan_in) = sqrt(6 / fan_in)
    bound = math.sqrt(6.0 / in_features)
    w_pt = jax.random.uniform(key, (out_features, in_features), jnp.float32, -bound, bound)
    return w_pt.T  # store as (in, out) for x @ W


def _linear_bias(key, out_features, in_features):
    # PyTorch nn.Linear default bias init: U(-1/sqrt(fan_in), 1/sqrt(fan_in))
    bound = 1.0 / math.sqrt(in_features)
    return jax.random.uniform(key, (1, out_features), jnp.float32, -bound, bound)


def _pad2d(a, rows, cols):
    return jnp.pad(a, ((0, rows - a.shape[0]), (0, cols - a.shape[1])))


def init_dqn_params(key, input_dim, num_actions):
    """Init matching the PyTorch module, with all out-feature dims zero-padded
    to 128 lanes (padding is exact under matmul + ReLU)."""
    h1, h2 = 12, 8
    h1p = _round_up(h1, _LANE)
    h2p = _round_up(h2, _LANE)
    ap = _round_up(num_actions, _LANE)

    k1, k2, k3, k4, k5, k6 = jax.random.split(key, 6)
    return {
        "w1": _pad2d(_kaiming_uniform_relu(k1, h1, input_dim), input_dim, h1p),
        "b1": _pad2d(_linear_bias(k2, h1, input_dim), 1, h1p),
        "w2": _pad2d(_kaiming_uniform_relu(k3, h2, h1), h1p, h2p),
        "b2": _pad2d(_linear_bias(k4, h2, h1), 1, h2p),
        "w3": _pad2d(_kaiming_uniform_relu(k5, num_actions, h2), h2p, ap),
        "b3": _pad2d(_linear_bias(k6, num_actions, h2), 1, ap),
        "num_actions": num_actions,
    }


if __name__ == "__main__":
    key = jax.random.PRNGKey(0)
    batch, input_dim, num_actions = 2, 16, 4

    pkey, xkey = jax.random.split(key)
    params = init_dqn_params(pkey, input_dim, num_actions)
    x = jax.random.normal(xkey, (batch, input_dim), jnp.float32)

    q = dqn_forward(x, params)
    jax.block_until_ready(q)

    # Sanity: reference in plain JAX (padded weights are exact, then slice).
    h1 = jnp.maximum(x @ params["w1"] + params["b1"], 0.0)
    h2 = jnp.maximum(h1 @ params["w2"] + params["b2"], 0.0)
    q_ref = (h2 @ params["w3"] + params["b3"])[:, :num_actions]
    assert q.shape == (batch, num_actions)
    assert jnp.allclose(q, q_ref, atol=1e-5, rtol=1e-5)

    print("KERNEL_OK")
</pallas_src>

<mosaic_0001>
module attributes {stable_mosaic.version = 11 : i64} {
  func.func @_dqn_mlp_kernel(%arg0: i32, %arg1: memref<8x16xf32, #tpu.memory_space<vmem>>, %arg2: memref<16x128xf32, #tpu.memory_space<vmem>>, %arg3: memref<1x128xf32, #tpu.memory_space<vmem>>, %arg4: memref<128x128xf32, #tpu.memory_space<vmem>>, %arg5: memref<1x128xf32, #tpu.memory_space<vmem>>, %arg6: memref<128x128xf32, #tpu.memory_space<vmem>>, %arg7: memref<1x128xf32, #tpu.memory_space<vmem>>, %arg8: memref<8x128xf32, #tpu.memory_space<vmem>>) attributes {dimension_semantics = [#tpu.dimension_semantics<parallel>], iteration_bounds = array<i64: 1>, scalar_prefetch = 0 : i64, scratch_operands = 0 : i64, tpu.core_type = #tpu.core_type<tc>, window_params = [{transform_indices = @transform_0, window_bounds = array<i64: 8, 16>}, {pipeline_mode = #tpu.pipeline_mode<synchronous>, transform_indices = @transform_1, window_bounds = array<i64: 16, 128>}, {pipeline_mode = #tpu.pipeline_mode<synchronous>, transform_indices = @transform_2, window_bounds = array<i64: 1, 128>}, {pipeline_mode = #tpu.pipeline_mode<synchronous>, transform_indices = @transform_3, window_bounds = array<i64: 128, 128>}, {pipeline_mode = #tpu.pipeline_mode<synchronous>, transform_indices = @transform_4, window_bounds = array<i64: 1, 128>}, {pipeline_mode = #tpu.pipeline_mode<synchronous>, transform_indices = @transform_5, window_bounds = array<i64: 128, 128>}, {pipeline_mode = #tpu.pipeline_mode<synchronous>, transform_indices = @transform_6, window_bounds = array<i64: 1, 128>}, {transform_indices = @transform_7, window_bounds = array<i64: 8, 128>}]} {
    %c0 = arith.constant 0 : index
    %c0_0 = arith.constant 0 : index
    %0 = vector.load %arg1[%c0, %c0_0] : memref<8x16xf32, #tpu.memory_space<vmem>>, vector<8x16xf32>
    %c0_1 = arith.constant 0 : index
    %c0_2 = arith.constant 0 : index
    %1 = vector.load %arg2[%c0_1, %c0_2] : memref<16x128xf32, #tpu.memory_space<vmem>>, vector<16x128xf32>
    %cst = arith.constant dense<0.000000e+00> : vector<8x128xf32>
    %2 = tpu.matmul %0, %1, %cst {dimension_numbers = #tpu.dot_dimension_numbers<[1], [0], [0], [1], [0, 0, 1, 1], [], []>} : vector<8x16xf32>, vector<16x128xf32>, vector<8x128xf32> -> vector<8x128xf32>
    %c0_3 = arith.constant 0 : index
    %c0_4 = arith.constant 0 : index
    %3 = vector.load %arg3[%c0_3, %c0_4] : memref<1x128xf32, #tpu.memory_space<vmem>>, vector<1x128xf32>
    %4 = vector.broadcast %3 : vector<1x128xf32> to vector<8x128xf32>
    %5 = arith.addf %2, %4 : vector<8x128xf32>
    %cst_5 = arith.constant 0.000000e+00 : f32
    %6 = vector.broadcast %cst_5 : f32 to vector<8x128xf32>
    %7 = arith.maximumf %5, %6 : vector<8x128xf32>
    %c0_6 = arith.constant 0 : index
    %c0_7 = arith.constant 0 : index
    %8 = vector.load %arg4[%c0_6, %c0_7] : memref<128x128xf32, #tpu.memory_space<vmem>>, vector<128x128xf32>
    %cst_8 = arith.constant dense<0.000000e+00> : vector<8x128xf32>
    %9 = tpu.matmul %7, %8, %cst_8 {dimension_numbers = #tpu.dot_dimension_numbers<[1], [0], [0], [1], [0, 0, 1, 1], [], []>} : vector<8x128xf32>, vector<128x128xf32>, vector<8x128xf32> -> vector<8x128xf32>
    %c0_9 = arith.constant 0 : index
    %c0_10 = arith.constant 0 : index
    %10 = vector.load %arg5[%c0_9, %c0_10] : memref<1x128xf32, #tpu.memory_space<vmem>>, vector<1x128xf32>
    %11 = vector.broadcast %10 : vector<1x128xf32> to vector<8x128xf32>
    %12 = arith.addf %9, %11 : vector<8x128xf32>
    %cst_11 = arith.constant 0.000000e+00 : f32
    %13 = vector.broadcast %cst_11 : f32 to vector<8x128xf32>
    %14 = arith.maximumf %12, %13 : vector<8x128xf32>
    %c0_12 = arith.constant 0 : index
    %c0_13 = arith.constant 0 : index
    %15 = vector.load %arg6[%c0_12, %c0_13] : memref<128x128xf32, #tpu.memory_space<vmem>>, vector<128x128xf32>
    %cst_14 = arith.constant dense<0.000000e+00> : vector<8x128xf32>
    %16 = tpu.matmul %14, %15, %cst_14 {dimension_numbers = #tpu.dot_dimension_numbers<[1], [0], [0], [1], [0, 0, 1, 1], [], []>} : vector<8x128xf32>, vector<128x128xf32>, vector<8x128xf32> -> vector<8x128xf32>
    %c0_15 = arith.constant 0 : index
    %c0_16 = arith.constant 0 : index
    %17 = vector.load %arg7[%c0_15, %c0_16] : memref<1x128xf32, #tpu.memory_space<vmem>>, vector<1x128xf32>
    %18 = vector.broadcast %17 : vector<1x128xf32> to vector<8x128xf32>
    %19 = arith.addf %16, %18 : vector<8x128xf32>
    %c0_17 = arith.constant 0 : index
    %c0_18 = arith.constant 0 : index
    %20 = vector.load %arg8[%c0_17, %c0_18] : memref<8x128xf32, #tpu.memory_space<vmem>>, vector<8x128xf32>
    tpu.vector_store %arg8[%c0_17, %c0_18], %19 {strides = array<i32>} : memref<8x128xf32, #tpu.memory_space<vmem>>, vector<8x128xf32>,
    return
  }
  func.func @transform_0(%arg0: i32) -> (i32, i32) {
    %c0_i32 = arith.constant 0 : i32
    %c0_i32_0 = arith.constant 0 : i32
    return %arg0, %c0_i32 : i32, i32
  }
  func.func @transform_1(%arg0: i32) -> (i32, i32) {
    %c0_i32 = arith.constant 0 : i32
    %c0_i32_0 = arith.constant 0 : i32
    %c0_i32_1 = arith.constant 0 : i32
    return %c0_i32, %c0_i32_0 : i32, i32
  }
  func.func @transform_2(%arg0: i32) -> (i32, i32) {
    %c0_i32 = arith.constant 0 : i32
    %c0_i32_0 = arith.constant 0 : i32
    %c0_i32_1 = arith.constant 0 : i32
    return %c0_i32, %c0_i32_0 : i32, i32
  }
  func.func @transform_3(%arg0: i32) -> (i32, i32) {
    %c0_i32 = arith.constant 0 : i32
    %c0_i32_0 = arith.constant 0 : i32
    %c0_i32_1 = arith.constant 0 : i32
    return %c0_i32, %c0_i32_0 : i32, i32
  }
  func.func @transform_4(%arg0: i32) -> (i32, i32) {
    %c0_i32 = arith.constant 0 : i32
    %c0_i32_0 = arith.constant 0 : i32
    %c0_i32_1 = arith.constant 0 : i32
    return %c0_i32, %c0_i32_0 : i32, i32
  }
  func.func @transform_5(%arg0: i32) -> (i32, i32) {
    %c0_i32 = arith.constant 0 : i32
    %c0_i32_0 = arith.constant 0 : i32
    %c0_i32_1 = arith.constant 0 : i32
    return %c0_i32, %c0_i32_0 : i32, i32
  }
  func.func @transform_6(%arg0: i32) -> (i32, i32) {
    %c0_i32 = arith.constant 0 : i32
    %c0_i32_0 = arith.constant 0 : i32
    %c0_i32_1 = arith.constant 0 : i32
    return %c0_i32, %c0_i32_0 : i32, i32
  }
  func.func @transform_7(%arg0: i32) -> (i32, i32) {
    %c0_i32 = arith.constant 0 : i32
    %c0_i32_0 = arith.constant 0 : i32
    return %arg0, %c0_i32 : i32, i32
  }
}

</mosaic_0001>

<llo_original>
// kernel: tpu_custom_call.1
$region0: #{tpu_custom_call.1}
  #allocation0 [shape = 'u32[]', space=smem, size = 0x4, offset = 0x4, fixed_abs, tag = 'smem constant byte address 0x4 - core index']
  #allocation1 [shape = 'u32[72,128]{1,0:T(1,128)}', space=vmem, size = 0x9000, scoped, tag = 'internal scratch']
  %s0 = inlined_call_operand.hbm [shape: f32[8,16], index: 0, kind: input, shape index: {}]
  %s1 = inlined_call_operand.hbm [shape: f32[16,128], index: 1, kind: input, shape index: {}]
  %s2 = inlined_call_operand.vmem [shape: f32[1,128], index: 2, kind: input, shape index: {}]
  %s3 = inlined_call_operand.hbm [shape: f32[128,128], index: 3, kind: input, shape index: {}]
  %s4 = inlined_call_operand.vmem [shape: f32[1,128], index: 4, kind: input, shape index: {}]
  %s5 = inlined_call_operand.hbm [shape: f32[128,128], index: 5, kind: input, shape index: {}]
  %s6 = inlined_call_operand.vmem [shape: f32[1,128], index: 6, kind: input, shape index: {}]
  %s7 = inlined_call_operand.hbm [shape: f32[8,128], index: 7, kind: output, shape index: {}]
  %s8 = sld [smem:[#allocation0]]
  $region54: #{tpu_custom_call.1} parent=0
    _
  %s10 = ssub.s32 1, %s8
  %s11 = scalar_select 0, %s10, %s8
  $region1: #{tpu_custom_call.1} parent=0
    #allocation2 [shape = 'u8[4096]{0}', space=vmem, size = 0x1000, scoped, tag = 'input window, operand 0, single buffered']
    #allocation3 [shape = 's32[1]{0}', space=sflag, size = 0x4, scoped, tag = 'scoped memory for tpu_custom_call.1']
    #allocation4 [shape = 's32[1]{0}', space=sflag, size = 0x4, scoped, tag = 'scoped memory for tpu_custom_call.1']
    #allocation5 [shape = 'u8[8192]{0}', space=vmem, size = 0x2000, scoped, tag = 'input window, operand 1, single buffered']
    #allocation6 [shape = 's32[1]{0}', space=sflag, size = 0x4, scoped, tag = 'scoped memory for tpu_custom_call.1']
    #allocation7 [shape = 'u8[65536]{0}', space=vmem, size = 0x10000, scoped, tag = 'input window, operand 3, single buffered']
    #allocation8 [shape = 'u8[65536]{0}', space=vmem, size = 0x10000, scoped, tag = 'input window, operand 5, single buffered']
    #allocation9 [shape = 's32[1]{0}', space=sflag, size = 0x4, scoped, tag = 'scoped memory for tpu_custom_call.1']
    #allocation10 [shape = 'u8[4096]{0}', space=vmem, size = 0x1000, scoped, tag = 'output window, operand 0, single buffered']
    %12 = vsyncpa [#allocation3], 0
    %13 = vsyncpa [#allocation6], 0
    %14 = vsyncpa [#allocation9], 0
    %15 = vsyncpa [#allocation4], 0
    // Predicated region
    $region2: #{tpu_custom_call.1} parent=1 // pred_check
      _
    $region3: #{tpu_custom_call.1} parent=1 // pred_check_branch
      %17 = sbr.rel (0) target = $region5
    $region4: #{tpu_custom_call.1} parent=1 // pred_region
      %19 = vsyncadd [#allocation3], 0
      %s21 = sshll.u32 %s0, 4
      %s22 = int_to_ptr.hbm [resolvable:$true] %s21
      %s23 = sshll.u32 [#allocation2], 4
      %s24 = int_to_ptr.vmem [resolvable:$true] %s23
      %26 = dma.hbm_to_vmem [thread:$0]  %s22, 128, %s24, [#allocation3]
    $region5: #{tpu_custom_call.1} parent=1 // pred_fallthru
      _
    // Predicated region
    $region6: #{tpu_custom_call.1} parent=1 // pred_check
      _
    $region7: #{tpu_custom_call.1} parent=1 // pred_check_branch
      %28 = sbr.rel (0) target = $region9
    $region8: #{tpu_custom_call.1} parent=1 // pred_region
      %30 = vsyncadd [#allocation6], 0
      %s31 = sshll.u32 %s1, 4
      %s32 = int_to_ptr.hbm [resolvable:$true] %s31
      %s33 = sshll.u32 [#allocation5], 4
      %s34 = int_to_ptr.vmem [resolvable:$true] %s33
      %39 = dma.hbm_to_vmem [thread:$0]  %s32, 256, %s34, [#allocation6], 128, 128, 8
    $region9: #{tpu_custom_call.1} parent=1 // pred_fallthru
      _
    // Predicated region
    $region10: #{tpu_custom_call.1} parent=1 // pred_check
      _
    $region11: #{tpu_custom_call.1} parent=1 // pred_check_branch
      %41 = sbr.rel (0) target = $region13
    $region12: #{tpu_custom_call.1} parent=1 // pred_region
      _
    $region13: #{tpu_custom_call.1} parent=1 // pred_fallthru
      _
    // Predicated region
    $region14: #{tpu_custom_call.1} parent=1 // pred_check
      _
    $region15: #{tpu_custom_call.1} parent=1 // pred_check_branch
      %43 = sbr.rel (0) target = $region17
    $region16: #{tpu_custom_call.1} parent=1 // pred_region
      %45 = vsyncadd [#allocation6], 0
      %s46 = sshll.u32 %s3, 4
      %s47 = int_to_ptr.hbm [resolvable:$true] %s46
      %s48 = sshll.u32 [#allocation7], 4
      %s49 = int_to_ptr.vmem [resolvable:$true] %s48
      %54 = dma.hbm_to_vmem [thread:$0]  %s47, 2048, %s49, [#allocation6], 128, 128, 8
    $region17: #{tpu_custom_call.1} parent=1 // pred_fallthru
      _
    // Predicated region
    $region18: #{tpu_custom_call.1} parent=1 // pred_check
      _
    $region19: #{tpu_custom_call.1} parent=1 // pred_check_branch
      %56 = sbr.rel (0) target = $region21
    $region20: #{tpu_custom_call.1} parent=1 // pred_region
      _
    $region21: #{tpu_custom_call.1} parent=1 // pred_fallthru
      _
    // Predicated region
    $region22: #{tpu_custom_call.1} parent=1 // pred_check
      _
    $region23: #{tpu_custom_call.1} parent=1 // pred_check_branch
      %58 = sbr.rel (0) target = $region25
    $region24: #{tpu_custom_call.1} parent=1 // pred_region
      %60 = vsyncadd [#allocation9], 0
      %s61 = sshll.u32 %s5, 4
      %s62 = int_to_ptr.hbm [resolvable:$true] %s61
      %s63 = sshll.u32 [#allocation8], 4
      %s64 = int_to_ptr.vmem [resolvable:$true] %s63
      %69 = dma.hbm_to_vmem [thread:$0]  %s62, 2048, %s64, [#allocation9], 128, 128, 8
    $region25: #{tpu_custom_call.1} parent=1 // pred_fallthru
      _
    // Predicated region
    $region26: #{tpu_custom_call.1} parent=1 // pred_check
      _
    $region27: #{tpu_custom_call.1} parent=1 // pred_check_branch
      %71 = sbr.rel (0) target = $region29
    $region28: #{tpu_custom_call.1} parent=1 // pred_region
      _
    $region29: #{tpu_custom_call.1} parent=1 // pred_fallthru
      _
    // Predicated region
    $region30: #{tpu_custom_call.1} parent=1 // pred_check
      _
    $region31: #{tpu_custom_call.1} parent=1 // pred_check_branch
      %73 = sbr.rel (0) target = $region33
    $region32: #{tpu_custom_call.1} parent=1 // pred_region
      %75 = dma.done [#allocation3], 128
    $region33: #{tpu_custom_call.1} parent=1 // pred_fallthru
      _
    // Predicated region
    $region34: #{tpu_custom_call.1} parent=1 // pred_check
      _
    $region35: #{tpu_custom_call.1} parent=1 // pred_check_branch
      %77 = sbr.rel (0) target = $region37
    $region36: #{tpu_custom_call.1} parent=1 // pred_region
      %79 = dma.done [#allocation6], 256
    $region37: #{tpu_custom_call.1} parent=1 // pred_fallthru
      _
    // Predicated region
    $region38: #{tpu_custom_call.1} parent=1 // pred_check
      _
    $region39: #{tpu_custom_call.1} parent=1 // pred_check_branch
      %81 = sbr.rel (0) target = $region41
    $region40: #{tpu_custom_call.1} parent=1 // pred_region
      %83 = dma.done [#allocation6], 2048
    $region41: #{tpu_custom_call.1} parent=1 // pred_fallthru
      _
    // Predicated region
    $region42: #{tpu_custom_call.1} parent=1 // pred_check
      _
    $region43: #{tpu_custom_call.1} parent=1 // pred_check_branch
      %85 = sbr.rel (0) target = $region45
    $region44: #{tpu_custom_call.1} parent=1 // pred_region
      %87 = dma.done [#allocation9], 2048
    $region45: #{tpu_custom_call.1} parent=1 // pred_fallthru
      _
    %v88 = vld [vmem:[#allocation2] sm:$0xff]
    %v89 = vld [vmem:[#allocation5] sm:$0xff]
    %v90 = vld [vmem:[#allocation5 + $0x8] sm:$0xff]
    %v91 = vld [vmem:[%s2] sm:$0x1]
    %v93 = vperm.slane %v91, 0
    %vm95 = vcmask 130048
    %v97 = vsel %vm95, %v88, 0
    %99 = vmatpush.msra.mxu0 0.0
    %100 = vmatpush.msra.mxu0 0.0
    %101 = vmatpush.msra.mxu0 0.0
    %102 = vmatpush.msra.mxu0 0.0
    %103 = vmatpush.msra.mxu0 0.0
    %104 = vmatpush.msra.mxu0 0.0
    %105 = vmatpush.msra.mxu0 0.0
    %106 = vmatpush.msra.mxu0 0.0
    %107 = vmatpush.msra.mxu0 0.0
    %108 = vmatpush.msra.mxu0 0.0
    %109 = vmatpush.msra.mxu0 0.0
    %110 = vmatpush.msra.mxu0 0.0
    %111 = vmatpush.msra.mxu0 0.0
    %112 = vmatpush.msra.mxu0 0.0
    %113 = vmatpush.msra.mxu0 %v90
    %114 = vmatpush.msra.mxu0 %v89
    %115 = vmatmul.f32.gmra.mxu0 %v97
    %v116 = vpop.f32.mrf.mxu0
    %v117 = vadd.f32 %v93, %v116
    %118 = vdwg.mxu0
    %v119 = vmax.f32 %v117, 0.0
    %v120 = vld [vmem:[#allocation7] sm:$0xff]
    %v121 = vld [vmem:[#allocation7 + $0x8] sm:$0xff]
    %v122 = vld [vmem:[#allocation7 + $0x10] sm:$0xff]
    %v123 = vld [vmem:[#allocation7 + $0x18] sm:$0xff]
    %v124 = vld [vmem:[#allocation7 + $0x20] sm:$0xff]
    %v125 = vld [vmem:[#allocation7 + $0x28] sm:$0xff]
    %v126 = vld [vmem:[#allocation7 + $0x30] sm:$0xff]
    %v127 = vld [vmem:[#allocation7 + $0x38] sm:$0xff]
    %v128 = vld [vmem:[#allocation7 + $0x40] sm:$0xff]
    %v129 = vld [vmem:[#allocation7 + $0x48] sm:$0xff]
    %v130 = vld [vmem:[#allocation7 + $0x50] sm:$0xff]
    %v131 = vld [vmem:[#allocation7 + $0x58] sm:$0xff]
    %v132 = vld [vmem:[#allocation7 + $0x60] sm:$0xff]
    %v133 = vld [vmem:[#allocation7 + $0x68] sm:$0xff]
    %v134 = vld [vmem:[#allocation7 + $0x70] sm:$0xff]
    %v135 = vld [vmem:[#allocation7 + $0x78] sm:$0xff]
    %v136 = vld [vmem:[%s4] sm:$0x1]
    %v138 = vperm.slane %v136, 0
    %140 = vmatpush.msra.mxu0 %v135
    %141 = vmatpush.msra.mxu0 %v134
    %142 = vmatpush.msra.mxu0 %v133
    %143 = vmatpush.msra.mxu0 %v132
    %144 = vmatpush.msra.mxu0 %v131
    %145 = vmatpush.msra.mxu0 %v130
    %146 = vmatpush.msra.mxu0 %v129
    %147 = vmatpush.msra.mxu0 %v128
    %148 = vmatpush.msra.mxu0 %v127
    %149 = vmatpush.msra.mxu0 %v126
    %150 = vmatpush.msra.mxu0 %v125
    %151 = vmatpush.msra.mxu0 %v124
    %152 = vmatpush.msra.mxu0 %v123
    %153 = vmatpush.msra.mxu0 %v122
    %154 = vmatpush.msra.mxu0 %v121
    %155 = vmatpush.msra.mxu0 %v120
    %156 = vmatmul.f32.gmra.mxu0 %v119
    %v157 = vpop.f32.mrf.mxu0
    %v158 = vadd.f32 %v138, %v157
    %159 = vdwg.mxu0
    %v160 = vmax.f32 %v158, 0.0
    %v161 = vld [vmem:[#allocation8] sm:$0xff]
    %v162 = vld [vmem:[#allocation8 + $0x8] sm:$0xff]
    %v163 = vld [vmem:[#allocation8 + $0x10] sm:$0xff]
    %v164 = vld [vmem:[#allocation8 + $0x18] sm:$0xff]
    %v165 = vld [vmem:[#allocation8 + $0x20] sm:$0xff]
    %v166 = vld [vmem:[#allocation8 + $0x28] sm:$0xff]
    %v167 = vld [vmem:[#allocation8 + $0x30] sm:$0xff]
    %v168 = vld [vmem:[#allocation8 + $0x38] sm:$0xff]
    %v169 = vld [vmem:[#allocation8 + $0x40] sm:$0xff]
    %v170 = vld [vmem:[#allocation8 + $0x48] sm:$0xff]
    %v171 = vld [vmem:[#allocation8 + $0x50] sm:$0xff]
    %v172 = vld [vmem:[#allocation8 + $0x58] sm:$0xff]
    %v173 = vld [vmem:[#allocation8 + $0x60] sm:$0xff]
    %v174 = vld [vmem:[#allocation8 + $0x68] sm:$0xff]
    %v175 = vld [vmem:[#allocation8 + $0x70] sm:$0xff]
    %v176 = vld [vmem:[#allocation8 + $0x78] sm:$0xff]
    %v177 = vld [vmem:[%s6] sm:$0x1]
    %v179 = vperm.slane %v177, 0
    %181 = vmatpush.msra.mxu0 %v176
    %182 = vmatpush.msra.mxu0 %v175
    %183 = vmatpush.msra.mxu0 %v174
    %184 = vmatpush.msra.mxu0 %v173
    %185 = vmatpush.msra.mxu0 %v172
    %186 = vmatpush.msra.mxu0 %v171
    %187 = vmatpush.msra.mxu0 %v170
    %188 = vmatpush.msra.mxu0 %v169
    %189 = vmatpush.msra.mxu0 %v168
    %190 = vmatpush.msra.mxu0 %v167
    %191 = vmatpush.msra.mxu0 %v166
    %192 = vmatpush.msra.mxu0 %v165
    %193 = vmatpush.msra.mxu0 %v164
    %194 = vmatpush.msra.mxu0 %v163
    %195 = vmatpush.msra.mxu0 %v162
    %196 = vmatpush.msra.mxu0 %v161
    %197 = vmatmul.f32.gmra.mxu0 %v160
    %v198 = vpop.f32.mrf.mxu0
    %v199 = vadd.f32 %v179, %v198
    %200 = vdwg.mxu0
    %201 = vst [vmem:[#allocation10] sm:$0xff] %v199
    // Predicated region
    $region46: #{tpu_custom_call.1} parent=1 // pred_check
      _
    $region47: #{tpu_custom_call.1} parent=1 // pred_check_branch
      %203 = sbr.rel (0) target = $region49
    $region48: #{tpu_custom_call.1} parent=1 // pred_region
      %205 = vsyncadd [#allocation4], 0
      %s207 = sshll.u32 [#allocation10], 4
      %s208 = int_to_ptr.vmem [resolvable:$true] %s207
      %s209 = sshll.u32 %s7, 4
      %s210 = int_to_ptr.hbm [resolvable:$true] %s209
      %212 = dma.vmem_to_hbm [thread:$0]  %s208, 128, %s210, [#allocation4]
    $region49: #{tpu_custom_call.1} parent=1 // pred_fallthru
      _
    // Predicated region
    $region50: #{tpu_custom_call.1} parent=1 // pred_check
      _
    $region51: #{tpu_custom_call.1} parent=1 // pred_check_branch
      %214 = sbr.rel (0) target = $region53
    $region52: #{tpu_custom_call.1} parent=1 // pred_region
      %216 = dma.done [#allocation4], 128
    $region53: #{tpu_custom_call.1} parent=1 // pred_fallthru
      _
    %217 = vsyncpa [#allocation3], 1
    %218 = vsyncpa [#allocation6], 1
    %219 = vsyncpa [#allocation9], 1
    %220 = vsyncpa [#allocation4], 1

</llo_original>
